<compile_context>
chip_gen: v7x
topology: tpu7x:2x2x1
jax: 0.10.0
libtpu: 0.0.40
codegen_flags: <defaults>
</compile_context>

<pallas_src>
import functools
import math

import jax
import jax.numpy as jnp
from jax.experimental import pallas as pl
from jax.experimental.pallas import tpu as pltpu

LANES = 128
MAX_BLOCK_ROWS = 2048      # 2048 x 128 f32 = 1 MiB per input per step
MIN_BLOCK_ROWS = 8
VMEM_LIMIT_BYTES = 32 * 1024 * 1024


@functools.lru_cache(maxsize=1)
def _num_parallel_cores():
    """2 only on parts whose TensorCores are shared by one program."""
    try:
        kind = jax.devices()[0].device_kind.lower()
    except Exception:  # pragma: no cover - defensive default
        return 1
    return 2 if any(t in kind for t in ("v4", "v5p", "v7", "7x")) else 1


def _pick_block_rows(rows, num_cores):
    """Largest power-of-two block (<= MAX) that still gives each core ~4 steps."""
    br = MAX_BLOCK_ROWS
    while br > MIN_BLOCK_ROWS and pl.cdiv(rows, br) < 4 * num_cores:
        br //= 2
    return br


def _masked_l1_kernel(pred_ref, gt_ref, mask_ref, sum_ref, cnt_ref, *,
                      n_rows, blocks_per_core, block_rows):
    c = pl.program_id(0)   # core / outer-parallel index
    i = pl.program_id(1)   # sequential row-block index within this core

    @pl.when(i == 0)
    def _init():
        sum_ref[...] = jnp.zeros_like(sum_ref)
        cnt_ref[...] = jnp.zeros_like(cnt_ref)

    # Global (unclamped) block number; detects both the ragged last block and
    # fully out-of-range (clamped duplicate) blocks.
    blk = c * blocks_per_core + i
    row0 = blk * block_rows
    is_full = row0 + block_rows <= n_rows

    def fold(x):
        # (block_rows, 128) -> (8, 128): layout-preserving sublane regrouping
        # followed by elementwise VPU adds; the cross-lane reduce happens once
        # in the wrapper.  (Temps stay ~1 MiB at block_rows=2048, well under
        # the raised VMEM limit.)
        return x.reshape(block_rows // 8, 8, LANES).sum(axis=0)

    def accumulate(sel):
        diff = jnp.abs(pred_ref[...].astype(jnp.float32)
                       - gt_ref[...].astype(jnp.float32))
        sum_ref[...] += fold(jnp.where(sel, diff, 0.0))      # garbage/NaN dropped
        cnt_ref[...] += fold(jnp.where(sel, 1.0, 0.0))

    # Fast path: interior (full) block — no iota / validity arithmetic.
    @pl.when(is_full)
    def _fast():
        accumulate(mask_ref[...] > 0)

    # Slow path: ragged last block or clamped duplicate block — mask out rows
    # beyond the array so out-of-bounds garbage never contributes.
    @pl.when(jnp.logical_not(is_full))
    def _tail():
        row = jax.lax.broadcasted_iota(jnp.int32, (block_rows, LANES), 0)
        valid = (row0 + row) < n_rows
        accumulate(jnp.logical_and(mask_ref[...] > 0, valid))


def masked_l1_loss(pred, gt_dose, possible_dose_mask):
    """Pallas implementation of the DoseUformer Loss.forward."""
    assert pred.shape == gt_dose.shape == possible_dose_mask.shape

    total = math.prod(pred.shape)
    rows = total // LANES              # lane-aligned prefix rows
    tail = total - rows * LANES        # < 128 leftover elements

    pred_f = jnp.ravel(pred)
    gt_f = jnp.ravel(gt_dose)
    mask_f = jnp.ravel(possible_dose_mask)

    # Ragged remainder (< 128 elements): pure-JAX partial sums. No host-side
    # full-array pad; only the common lane-aligned case is fully zero-copy.
    if tail:
        tsel = mask_f[rows * LANES:] > 0
        tdiff = jnp.abs(pred_f[rows * LANES:].astype(jnp.float32)
                        - gt_f[rows * LANES:].astype(jnp.float32))
        tail_sum = jnp.sum(jnp.where(tsel, tdiff, 0.0))
        tail_cnt = jnp.sum(tsel.astype(jnp.float32))
    else:
        tail_sum = jnp.float32(0.0)
        tail_cnt = jnp.float32(0.0)

    if rows == 0:
        # Entire input smaller than one lane row.
        return tail_sum / tail_cnt

    def to_2d(x):
        if tail:
            x = x[:rows * LANES]
        return x.reshape(rows, LANES)

    pred2d, gt2d, mask2d = to_2d(pred_f), to_2d(gt_f), to_2d(mask_f)

    num_cores = _num_parallel_cores()
    block_rows = _pick_block_rows(rows, num_cores)
    total_blocks = pl.cdiv(rows, block_rows)
    bpc = pl.cdiv(total_blocks, num_cores)   # row-blocks per core

    def in_map(c, i):
        # Clamp so an (odd) tail block on the last core never maps past the
        # array; the in-kernel row-validity mask zeroes its contribution.
        return (jnp.minimum(c * bpc + i, total_blocks - 1), 0)

    in_spec = pl.BlockSpec((block_rows, LANES), in_map)
    out_spec = pl.BlockSpec((None, 8, LANES), lambda c, i: (c, 0, 0))

    kernel = functools.partial(_masked_l1_kernel,
                               n_rows=rows,
                               blocks_per_core=bpc,
                               block_rows=block_rows)

    sums, cnts = pl.pallas_call(
        kernel,
        out_shape=(
            jax.ShapeDtypeStruct((num_cores, 8, LANES), jnp.float32),
            jax.ShapeDtypeStruct((num_cores, 8, LANES), jnp.float32),
        ),
        grid_spec=pltpu.PrefetchScalarGridSpec(
            num_scalar_prefetch=0,
            grid=(num_cores, bpc),
            in_specs=[in_spec, in_spec, in_spec],
            out_specs=[out_spec, out_spec],
        ),
        compiler_params=pltpu.CompilerParams(
            dimension_semantics=("parallel", "arbitrary"),
            vmem_limit_bytes=VMEM_LIMIT_BYTES),
    )(pred2d, gt2d, mask2d)

    # Tiny epilogue: reduce the (num_cores, 8, 128) partials and divide.
    # NaN on an empty mask, matching PyTorch masked-mean semantics.
    return (jnp.sum(sums) + tail_sum) / (jnp.sum(cnts) + tail_cnt)


def _reference(pred, gt_dose, mask):
    sel = mask > 0
    return jnp.sum(jnp.abs(pred - gt_dose) * sel) / jnp.sum(sel)


if __name__ == "__main__":
    key = jax.random.PRNGKey(0)

    ok = True
    # Case 1: lane-aligned dose-volume-like shape (zero-copy fast path).
    # Case 2: ragged shape (exercises the slow tail block + JAX remainder).
    for shape in [(2, 4, 16, 16), (2, 3, 7, 11)]:
        key, k1, k2, k3 = jax.random.split(key, 4)
        pred = jax.random.normal(k1, shape, dtype=jnp.float32)
        gt_dose = jax.random.normal(k2, shape, dtype=jnp.float32)
        possible_dose_mask = (
            jax.random.uniform(k3, shape) > 0.5).astype(jnp.float32)

        loss = masked_l1_loss(pred, gt_dose, possible_dose_mask)
        loss = jax.block_until_ready(loss)

        ref = _reference(pred, gt_dose, possible_dose_mask)
        if not jnp.allclose(loss, ref, rtol=1e-5, atol=1e-6):
            ok = False
            print("MISMATCH", shape, loss, ref)

    if ok:
        print("KERNEL_OK")
</pallas_src>

<mosaic_0001>
module attributes {stable_mosaic.version = 11 : i64} {
  func.func @_masked_l1_kernel(%arg0: i32, %arg1: i32, %arg2: memref<8x128xf32, #tpu.memory_space<vmem>>, %arg3: memref<8x128xf32, #tpu.memory_space<vmem>>, %arg4: memref<8x128xf32, #tpu.memory_space<vmem>>, %arg5: memref<1x8x128xf32, #tpu.memory_space<vmem>>, %arg6: memref<1x8x128xf32, #tpu.memory_space<vmem>>) attributes {dimension_semantics = [#tpu.dimension_semantics<parallel>, #tpu.dimension_semantics<arbitrary>], iteration_bounds = array<i64: 1, 2>, scalar_prefetch = 0 : i64, scratch_operands = 0 : i64, tpu.core_type = #tpu.core_type<tc>, window_params = [{transform_indices = @transform_0, window_bounds = array<i64: 8, 128>}, {transform_indices = @transform_1, window_bounds = array<i64: 8, 128>}, {transform_indices = @transform_2, window_bounds = array<i64: 8, 128>}, {transform_indices = @transform_3, window_bounds = array<i64: 1, 8, 128>}, {transform_indices = @transform_4, window_bounds = array<i64: 1, 8, 128>}]} {
    %c0_i32 = arith.constant 0 : i32
    %0 = arith.cmpi eq, %arg1, %c0_i32 : i32
    %1 = arith.extui %0 : i1 to i32
    %c0_i32_0 = arith.constant 0 : i32
    %2 = arith.cmpi ne, %1, %c0_i32_0 : i32
    scf.if %2 {
      %cst = arith.constant 0.000000e+00 : f32
      %13 = vector.broadcast %cst : f32 to vector<8x128xf32>
      %c0 = arith.constant 0 : index
      %c0_4 = arith.constant 0 : index
      %c0_5 = arith.constant 0 : index
      %14 = vector.load %arg5[%c0, %c0_4, %c0_5] : memref<1x8x128xf32, #tpu.memory_space<vmem>>, vector<1x8x128xf32>
      %15 = vector.shape_cast %14 : vector<1x8x128xf32> to vector<8x128xf32>
      %16 = vector.shape_cast %13 : vector<8x128xf32> to vector<1x8x128xf32>
      tpu.vector_store %arg5[%c0, %c0_4, %c0_5], %16 {strides = array<i32>} : memref<1x8x128xf32, #tpu.memory_space<vmem>>, vector<1x8x128xf32>,
      %cst_6 = arith.constant 0.000000e+00 : f32
      %17 = vector.broadcast %cst_6 : f32 to vector<8x128xf32>
      %c0_7 = arith.constant 0 : index
      %c0_8 = arith.constant 0 : index
      %c0_9 = arith.constant 0 : index
      %18 = vector.load %arg6[%c0_7, %c0_8, %c0_9] : memref<1x8x128xf32, #tpu.memory_space<vmem>>, vector<1x8x128xf32>
      %19 = vector.shape_cast %18 : vector<1x8x128xf32> to vector<8x128xf32>
      %20 = vector.shape_cast %17 : vector<8x128xf32> to vector<1x8x128xf32>
      tpu.vector_store %arg6[%c0_7, %c0_8, %c0_9], %20 {strides = array<i32>} : memref<1x8x128xf32, #tpu.memory_space<vmem>>, vector<1x8x128xf32>,
    } else {
    }
    %c2_i32 = arith.constant 2 : i32
    %3 = arith.muli %arg0, %c2_i32 : i32
    %4 = arith.addi %3, %arg1 : i32
    %c8_i32 = arith.constant 8 : i32
    %5 = arith.muli %4, %c8_i32 : i32
    %c8_i32_1 = arith.constant 8 : i32
    %6 = arith.addi %5, %c8_i32_1 : i32
    %c16_i32 = arith.constant 16 : i32
    %7 = arith.cmpi sle, %6, %c16_i32 : i32
    %8 = arith.extui %7 : i1 to i32
    %c0_i32_2 = arith.constant 0 : i32
    %9 = arith.cmpi ne, %8, %c0_i32_2 : i32
    scf.if %9 {
      %c0 = arith.constant 0 : index
      %c0_4 = arith.constant 0 : index
      %13 = vector.load %arg4[%c0, %c0_4] : memref<8x128xf32, #tpu.memory_space<vmem>>, vector<8x128xf32>
      %cst = arith.constant 0.000000e+00 : f32
      %14 = vector.broadcast %cst : f32 to vector<8x128xf32>
      %15 = arith.cmpf ogt, %13, %14 : vector<8x128xf32>
      %c0_5 = arith.constant 0 : index
      %c0_6 = arith.constant 0 : index
      %16 = vector.load %arg2[%c0_5, %c0_6] : memref<8x128xf32, #tpu.memory_space<vmem>>, vector<8x128xf32>
      %c0_7 = arith.constant 0 : index
      %c0_8 = arith.constant 0 : index
      %17 = vector.load %arg3[%c0_7, %c0_8] : memref<8x128xf32, #tpu.memory_space<vmem>>, vector<8x128xf32>
      %18 = arith.subf %16, %17 : vector<8x128xf32>
      %19 = math.absf %18 : vector<8x128xf32>
      %c0_9 = arith.constant 0 : index
      %c0_10 = arith.constant 0 : index
      %c0_11 = arith.constant 0 : index
      %20 = vector.load %arg5[%c0_9, %c0_10, %c0_11] : memref<1x8x128xf32, #tpu.memory_space<vmem>>, vector<1x8x128xf32>
      %21 = vector.shape_cast %20 : vector<1x8x128xf32> to vector<8x128xf32>
      %cst_12 = arith.constant 0.000000e+00 : f32
      %22 = vector.broadcast %cst_12 : f32 to vector<8x128xf32>
      %23 = arith.select %15, %19, %22 : vector<8x128xi1>, vector<8x128xf32>
      %24 = vector.shape_cast %23 : vector<8x128xf32> to vector<1x8x128xf32>
      %cst_13 = arith.constant dense<0.000000e+00> : vector<8x128xf32>
      %25 = vector.multi_reduction <add>, %24, %cst_13 [0] : vector<1x8x128xf32> to vector<8x128xf32>
      %26 = arith.addf %21, %25 : vector<8x128xf32>
      %c0_14 = arith.constant 0 : index
      %c0_15 = arith.constant 0 : index
      %c0_16 = arith.constant 0 : index
      %27 = vector.load %arg5[%c0_14, %c0_15, %c0_16] : memref<1x8x128xf32, #tpu.memory_space<vmem>>, vector<1x8x128xf32>
      %28 = vector.shape_cast %27 : vector<1x8x128xf32> to vector<8x128xf32>
      %29 = vector.shape_cast %26 : vector<8x128xf32> to vector<1x8x128xf32>
      tpu.vector_store %arg5[%c0_14, %c0_15, %c0_16], %29 {strides = array<i32>} : memref<1x8x128xf32, #tpu.memory_space<vmem>>, vector<1x8x128xf32>,
      %c0_17 = arith.constant 0 : index
      %c0_18 = arith.constant 0 : index
      %c0_19 = arith.constant 0 : index
      %30 = vector.load %arg6[%c0_17, %c0_18, %c0_19] : memref<1x8x128xf32, #tpu.memory_space<vmem>>, vector<1x8x128xf32>
      %31 = vector.shape_cast %30 : vector<1x8x128xf32> to vector<8x128xf32>
      %cst_20 = arith.constant 1.000000e+00 : f32
      %cst_21 = arith.constant 0.000000e+00 : f32
      %32 = vector.broadcast %cst_20 : f32 to vector<8x128xf32>
      %33 = vector.broadcast %cst_21 : f32 to vector<8x128xf32>
      %34 = arith.select %15, %32, %33 : vector<8x128xi1>, vector<8x128xf32>
      %35 = vector.shape_cast %34 : vector<8x128xf32> to vector<1x8x128xf32>
      %cst_22 = arith.constant dense<0.000000e+00> : vector<8x128xf32>
      %36 = vector.multi_reduction <add>, %35, %cst_22 [0] : vector<1x8x128xf32> to vector<8x128xf32>
      %37 = arith.addf %31, %36 : vector<8x128xf32>
      %c0_23 = arith.constant 0 : index
      %c0_24 = arith.constant 0 : index
      %c0_25 = arith.constant 0 : index
      %38 = vector.load %arg6[%c0_23, %c0_24, %c0_25] : memref<1x8x128xf32, #tpu.memory_space<vmem>>, vector<1x8x128xf32>
      %39 = vector.shape_cast %38 : vector<1x8x128xf32> to vector<8x128xf32>
      %40 = vector.shape_cast %37 : vector<8x128xf32> to vector<1x8x128xf32>
      tpu.vector_store %arg6[%c0_23, %c0_24, %c0_25], %40 {strides = array<i32>} : memref<1x8x128xf32, #tpu.memory_space<vmem>>, vector<1x8x128xf32>,
    } else {
    }
    %true = arith.constant true
    %10 = arith.xori %7, %true : i1
    %11 = arith.extui %10 : i1 to i32
    %c0_i32_3 = arith.constant 0 : i32
    %12 = arith.cmpi ne, %11, %c0_i32_3 : i32
    scf.if %12 {
      %13 = tpu.iota {dimensions = array<i32: 0>} : vector<8x128xi32>
      %14 = vector.broadcast %5 : i32 to vector<8x128xi32>
      %15 = arith.addi %14, %13 : vector<8x128xi32>
      %c16_i32_4 = arith.constant 16 : i32
      %16 = vector.broadcast %c16_i32_4 : i32 to vector<8x128xi32>
      %17 = arith.cmpi slt, %15, %16 : vector<8x128xi32>
      %c0 = arith.constant 0 : index
      %c0_5 = arith.constant 0 : index
      %18 = vector.load %arg4[%c0, %c0_5] : memref<8x128xf32, #tpu.memory_space<vmem>>, vector<8x128xf32>
      %cst = arith.constant 0.000000e+00 : f32
      %19 = vector.broadcast %cst : f32 to vector<8x128xf32>
      %20 = arith.cmpf ogt, %18, %19 : vector<8x128xf32>
      %21 = arith.andi %20, %17 : vector<8x128xi1>
      %c0_6 = arith.constant 0 : index
      %c0_7 = arith.constant 0 : index
      %22 = vector.load %arg2[%c0_6, %c0_7] : memref<8x128xf32, #tpu.memory_space<vmem>>, vector<8x128xf32>
      %c0_8 = arith.constant 0 : index
      %c0_9 = arith.constant 0 : index
      %23 = vector.load %arg3[%c0_8, %c0_9] : memref<8x128xf32, #tpu.memory_space<vmem>>, vector<8x128xf32>
      %24 = arith.subf %22, %23 : vector<8x128xf32>
      %25 = math.absf %24 : vector<8x128xf32>
      %c0_10 = arith.constant 0 : index
      %c0_11 = arith.constant 0 : index
      %c0_12 = arith.constant 0 : index
      %26 = vector.load %arg5[%c0_10, %c0_11, %c0_12] : memref<1x8x128xf32, #tpu.memory_space<vmem>>, vector<1x8x128xf32>
      %27 = vector.shape_cast %26 : vector<1x8x128xf32> to vector<8x128xf32>
      %cst_13 = arith.constant 0.000000e+00 : f32
      %28 = vector.broadcast %cst_13 : f32 to vector<8x128xf32>
      %29 = arith.select %21, %25, %28 : vector<8x128xi1>, vector<8x128xf32>
      %30 = vector.shape_cast %29 : vector<8x128xf32> to vector<1x8x128xf32>
      %cst_14 = arith.constant dense<0.000000e+00> : vector<8x128xf32>
      %31 = vector.multi_reduction <add>, %30, %cst_14 [0] : vector<1x8x128xf32> to vector<8x128xf32>
      %32 = arith.addf %27, %31 : vector<8x128xf32>
      %c0_15 = arith.constant 0 : index
      %c0_16 = arith.constant 0 : index
      %c0_17 = arith.constant 0 : index
      %33 = vector.load %arg5[%c0_15, %c0_16, %c0_17] : memref<1x8x128xf32, #tpu.memory_space<vmem>>, vector<1x8x128xf32>
      %34 = vector.shape_cast %33 : vector<1x8x128xf32> to vector<8x128xf32>
      %35 = vector.shape_cast %32 : vector<8x128xf32> to vector<1x8x128xf32>
      tpu.vector_store %arg5[%c0_15, %c0_16, %c0_17], %35 {strides = array<i32>} : memref<1x8x128xf32, #tpu.memory_space<vmem>>, vector<1x8x128xf32>,
      %c0_18 = arith.constant 0 : index
      %c0_19 = arith.constant 0 : index
      %c0_20 = arith.constant 0 : index
      %36 = vector.load %arg6[%c0_18, %c0_19, %c0_20] : memref<1x8x128xf32, #tpu.memory_space<vmem>>, vector<1x8x128xf32>
      %37 = vector.shape_cast %36 : vector<1x8x128xf32> to vector<8x128xf32>
      %cst_21 = arith.constant 1.000000e+00 : f32
      %cst_22 = arith.constant 0.000000e+00 : f32
      %38 = vector.broadcast %cst_21 : f32 to vector<8x128xf32>
      %39 = vector.broadcast %cst_22 : f32 to vector<8x128xf32>
      %40 = arith.select %21, %38, %39 : vector<8x128xi1>, vector<8x128xf32>
      %41 = vector.shape_cast %40 : vector<8x128xf32> to vector<1x8x128xf32>
      %cst_23 = arith.constant dense<0.000000e+00> : vector<8x128xf32>
      %42 = vector.multi_reduction <add>, %41, %cst_23 [0] : vector<1x8x128xf32> to vector<8x128xf32>
      %43 = arith.addf %37, %42 : vector<8x128xf32>
      %c0_24 = arith.constant 0 : index
      %c0_25 = arith.constant 0 : index
      %c0_26 = arith.constant 0 : index
      %44 = vector.load %arg6[%c0_24, %c0_25, %c0_26] : memref<1x8x128xf32, #tpu.memory_space<vmem>>, vector<1x8x128xf32>
      %45 = vector.shape_cast %44 : vector<1x8x128xf32> to vector<8x128xf32>
      %46 = vector.shape_cast %43 : vector<8x128xf32> to vector<1x8x128xf32>
      tpu.vector_store %arg6[%c0_24, %c0_25, %c0_26], %46 {strides = array<i32>} : memref<1x8x128xf32, #tpu.memory_space<vmem>>, vector<1x8x128xf32>,
    } else {
    }
    return
  }
  func.func @transform_0(%arg0: i32, %arg1: i32) -> (i32, i32) {
    %c2_i32 = arith.constant 2 : i32
    %0 = arith.muli %arg0, %c2_i32 : i32
    %1 = arith.addi %0, %arg1 : i32
    %c1_i32 = arith.constant 1 : i32
    %2 = arith.minsi %1, %c1_i32 : i32
    %c0_i32 = arith.constant 0 : i32
    %c0_i32_0 = arith.constant 0 : i32
    return %2, %c0_i32 : i32, i32
  }
  func.func @transform_1(%arg0: i32, %arg1: i32) -> (i32, i32) {
    %c2_i32 = arith.constant 2 : i32
    %0 = arith.muli %arg0, %c2_i32 : i32
    %1 = arith.addi %0, %arg1 : i32
    %c1_i32 = arith.constant 1 : i32
    %2 = arith.minsi %1, %c1_i32 : i32
    %c0_i32 = arith.constant 0 : i32
    %c0_i32_0 = arith.constant 0 : i32
    return %2, %c0_i32 : i32, i32
  }
  func.func @transform_2(%arg0: i32, %arg1: i32) -> (i32, i32) {
    %c2_i32 = arith.constant 2 : i32
    %0 = arith.muli %arg0, %c2_i32 : i32
    %1 = arith.addi %0, %arg1 : i32
    %c1_i32 = arith.constant 1 : i32
    %2 = arith.minsi %1, %c1_i32 : i32
    %c0_i32 = arith.constant 0 : i32
    %c0_i32_0 = arith.constant 0 : i32
    return %2, %c0_i32 : i32, i32
  }
  func.func @transform_3(%arg0: i32, %arg1: i32) -> (i32, i32, i32) {
    %c0_i32 = arith.constant 0 : i32
    %c0_i32_0 = arith.constant 0 : i32
    %c0_i32_1 = arith.constant 0 : i32
    return %arg0, %c0_i32, %c0_i32_0 : i32, i32, i32
  }
  func.func @transform_4(%arg0: i32, %arg1: i32) -> (i32, i32, i32) {
    %c0_i32 = arith.constant 0 : i32
    %c0_i32_0 = arith.constant 0 : i32
    %c0_i32_1 = arith.constant 0 : i32
    return %arg0, %c0_i32, %c0_i32_0 : i32, i32, i32
  }
}

</mosaic_0001>

<llo_original>
// kernel: tpu_custom_call.1
$region0: #{tpu_custom_call.1}
  #allocation0 [shape = 'u32[]', space=smem, size = 0x4, offset = 0x4, fixed_abs, tag = 'smem constant byte address 0x4 - core index']
  #allocation1 [shape = 'u32[144,128]{1,0:T(1,128)}', space=vmem, size = 0x12000, scoped, tag = 'internal scratch']
  %s0 = inlined_call_operand.hbm [shape: f32[16,128], index: 0, kind: input, shape index: {}]
  %s1 = inlined_call_operand.hbm [shape: f32[16,128], index: 1, kind: input, shape index: {}]
  %s2 = inlined_call_operand.hbm [shape: f32[16,128], index: 2, kind: input, shape index: {}]
  %s3 = inlined_call_operand.hbm [shape: f32[1,8,128], index: 3, kind: output, shape index: {0}]
  %s4 = inlined_call_operand.hbm [shape: f32[1,8,128], index: 4, kind: output, shape index: {1}]
  %5 = xla_tuple %s3, %s4
  %s6 = sld [smem:[#allocation0]]
  $region77: #{tpu_custom_call.1} parent=0
    _
  %s8 = ssub.s32 1, %s6
  %s9 = scalar_select 0, %s8, %s6
  $region1: #{tpu_custom_call.1} parent=0
    #allocation2 [shape = 'u8[8192]{0}', space=vmem, size = 0x2000, scoped, tag = 'input window, operand 0']
    #allocation3 [shape = 's32[2]{0}', space=sflag, size = 0x8, scoped, tag = 'scoped memory for tpu_custom_call.1']
    #allocation4 [shape = 's32[2]{0}', space=sflag, size = 0x8, scoped, tag = 'scoped memory for tpu_custom_call.1']
    #allocation5 [shape = 'u8[8192]{0}', space=vmem, size = 0x2000, scoped, tag = 'input window, operand 1']
    #allocation6 [shape = 's32[2]{0}', space=sflag, size = 0x8, scoped, tag = 'scoped memory for tpu_custom_call.1']
    #allocation7 [shape = 'u8[8192]{0}', space=vmem, size = 0x2000, scoped, tag = 'input window, operand 2']
    #allocation8 [shape = 'u8[4096]{0}', space=vmem, size = 0x1000, scoped, tag = 'output window, operand 0, single buffered']
    #allocation9 [shape = 'u8[4096]{0}', space=vmem, size = 0x1000, scoped, tag = 'output window, operand 1, single buffered']
    #allocation10 [shape = 's32[1]{0}', space=sflag, size = 0x4, scoped, tag = 'scoped memory for tpu_custom_call.1']
    %10 = vsyncpa [#allocation3], 0
    %s11 = scalar_lea.sflag [#allocation3], 1
    %12 = vsyncpa %s11, 0
    %13 = vsyncpa [#allocation6], 0
    %s14 = scalar_lea.sflag [#allocation6], 1
    %15 = vsyncpa %s14, 0
    %16 = vsyncpa [#allocation4], 0
    %17 = vsyncpa [#allocation10], 0
    loop: start=0, step=1, limit=4
    $region2: #{tpu_custom_call.1} parent=1 // loop_pre_header
      _
    $region3: #{tpu_custom_call.1} parent=1 // loop_header
      %s19 = sphi 0, %s23
      %p20 = scmp.ge.s32.totalorder %s19, 4
      %s26 = sphi 0, %s38
      %s27 = sphi 0, %s34
      %s28 = sphi 0, %s26
      %s29 = sphi 0, %s27
      %s30 = sphi 0, %s28
      %s31 = sphi 0, %s29
      %s49 = sphi 0, %s51
      %s52 = sphi 0, %s49
      %s53 = sphi 0, %s52
      %s69 = sphi 0, %s53
      %s83 = sphi 0, %s85
      %s86 = sphi 0, %s83
      %s87 = sphi 0, %s86
      %s103 = sphi 0, %s87
      %s117 = sphi 0, %s119
      %s120 = sphi 0, %s117
      %s121 = sphi 0, %s120
      %s137 = sphi 0, %s121
      %s143 = sphi 0, %s145
      %s146 = sphi 0, %s143
      %s147 = sphi 0, %s146
      %s163 = sphi 0, %s147
      %s169 = sphi 0, %s171
      %s172 = sphi 0, %s169
      %s173 = sphi 0, %s172
      %s189 = sphi 0, %s173
    $region4: #{tpu_custom_call.1} parent=1 // loop_header_branch
      %22 = sbr.rel (%p20) target = $region8
    $region5: #{tpu_custom_call.1} parent=1 // loop_body
      %s24 = ssub.s32 %s19, 1
      %s25 = ssub.s32 %s19, 2
      %s32 = sadd.s32 1, %s27
      %p33 = scmp.ge.s32.totalorder %s32, 2
      %s34 = scalar_select %p33, 0, %s32
      %s35 = sadd.s32 1, %s26
      %s36 = scalar_select %p33, %s35, %s26
      %p37 = scmp.ge.s32.totalorder %s36, 1
      %s38 = scalar_select %p37, 0, %s36
      %s39 = smul.u32 %s26, 2
      %s40 = sadd.s32 %s39, %s27
      %p41 = scmp.lt.s32.totalorder %s40, 1
      %s42 = scalar_select %p41, %s40, 1
      %s43 = smul.u32 %s38, 2
      %s44 = sadd.s32 %s43, %s34
      %p45 = scmp.lt.s32.totalorder %s44, 1
      %s46 = scalar_select %p45, %s44, 1
      %s47 = ssub.s32 %s42, %s46
      %p48 = scmp.eq.s32.totalorder %s47, 0
      %s50 = sadd.s32 %s49, 1
      %s51 = scalar_select %p48, %s49, %s50
      %p54 = pneg %p48
      %p55 = scmp.eq.s32.totalorder %s19, 1
      %p56 = por %p54, %p55
      %p57 = scmp.ne.s32.totalorder %s49, %s52
      %p58 = scmp.eq.s32.totalorder %s19, 0
      %p59 = por %p57, %p58
      %p60 = scmp.ne.s32.totalorder %s49, %s52
      %p61 = scmp.eq.s32.totalorder %s24, 1
      %p62 = por %p60, %p61
      %p63 = scmp.ne.s32.totalorder %s52, %s53
      %p64 = scmp.eq.s32.totalorder %s24, 0
      %p65 = por %p63, %p64
      %p66 = scmp.ne.s32.totalorder %s52, %s53
      %p67 = scmp.eq.s32.totalorder %s25, 1
      %p68 = por %p66, %p67
      %p70 = scmp.ne.s32.totalorder %s53, %s69
      %p71 = scmp.eq.s32.totalorder %s25, 0
      %p72 = por %p70, %p71
      %s73 = smul.u32 %s26, 2
      %s74 = sadd.s32 %s73, %s27
      %p75 = scmp.lt.s32.totalorder %s74, 1
      %s76 = scalar_select %p75, %s74, 1
      %s77 = smul.u32 %s38, 2
      %s78 = sadd.s32 %s77, %s34
      %p79 = scmp.lt.s32.totalorder %s78, 1
      %s80 = scalar_select %p79, %s78, 1
      %s81 = ssub.s32 %s76, %s80
      %p82 = scmp.eq.s32.totalorder %s81, 0
      %s84 = sadd.s32 %s83, 1
      %s85 = scalar_select %p82, %s83, %s84
      %p88 = pneg %p82
      %p89 = scmp.eq.s32.totalorder %s19, 1
      %p90 = por %p88, %p89
      %p91 = scmp.ne.s32.totalorder %s83, %s86
      %p92 = scmp.eq.s32.totalorder %s19, 0
      %p93 = por %p91, %p92
      %p94 = scmp.ne.s32.totalorder %s83, %s86
      %p95 = scmp.eq.s32.totalorder %s24, 1
      %p96 = por %p94, %p95
      %p97 = scmp.ne.s32.totalorder %s86, %s87
      %p98 = scmp.eq.s32.totalorder %s24, 0
      %p99 = por %p97, %p98
      %p100 = scmp.ne.s32.totalorder %s86, %s87
      %p101 = scmp.eq.s32.totalorder %s25, 1
      %p102 = por %p100, %p101
      %p104 = scmp.ne.s32.totalorder %s87, %s103
      %p105 = scmp.eq.s32.totalorder %s25, 0
      %p106 = por %p104, %p105
      %s107 = smul.u32 %s26, 2
      %s108 = sadd.s32 %s107, %s27
      %p109 = scmp.lt.s32.totalorder %s108, 1
      %s110 = scalar_select %p109, %s108, 1
      %s111 = smul.u32 %s38, 2
      %s112 = sadd.s32 %s111, %s34
      %p113 = scmp.lt.s32.totalorder %s112, 1
      %s114 = scalar_select %p113, %s112, 1
      %s115 = ssub.s32 %s110, %s114
      %p116 = scmp.eq.s32.totalorder %s115, 0
      %s118 = sadd.s32 %s117, 1
      %s119 = scalar_select %p116, %s117, %s118
      %p122 = pneg %p116
      %p123 = scmp.eq.s32.totalorder %s19, 1
      %p124 = por %p122, %p123
      %p125 = scmp.ne.s32.totalorder %s117, %s120
      %p126 = scmp.eq.s32.totalorder %s19, 0
      %p127 = por %p125, %p126
      %p128 = scmp.ne.s32.totalorder %s117, %s120
      %p129 = scmp.eq.s32.totalorder %s24, 1
      %p130 = por %p128, %p129
      %p131 = scmp.ne.s32.totalorder %s120, %s121
      %p132 = scmp.eq.s32.totalorder %s24, 0
      %p133 = por %p131, %p132
      %p134 = scmp.ne.s32.totalorder %s120, %s121
      %p135 = scmp.eq.s32.totalorder %s25, 1
      %p136 = por %p134, %p135
      %p138 = scmp.ne.s32.totalorder %s121, %s137
      %p139 = scmp.eq.s32.totalorder %s25, 0
      %p140 = por %p138, %p139
      %s141 = ssub.s32 %s26, %s38
      %p142 = scmp.eq.s32.totalorder %s141, 0
      %s144 = sadd.s32 %s143, 1
      %s145 = scalar_select %p142, %s143, %s144
      %p148 = pneg %p142
      %p149 = scmp.eq.s32.totalorder %s19, 1
      %p150 = por %p148, %p149
      %p151 = scmp.ne.s32.totalorder %s143, %s146
      %p152 = scmp.eq.s32.totalorder %s19, 0
      %p153 = por %p151, %p152
      %p154 = scmp.ne.s32.totalorder %s143, %s146
      %p155 = scmp.eq.s32.totalorder %s24, 1
      %p156 = por %p154, %p155
      %p157 = scmp.ne.s32.totalorder %s146, %s147
      %p158 = scmp.eq.s32.totalorder %s24, 0
      %p159 = por %p157, %p158
      %p160 = scmp.ne.s32.totalorder %s146, %s147
      %p161 = scmp.eq.s32.totalorder %s25, 1
      %p162 = por %p160, %p161
      %p164 = scmp.ne.s32.totalorder %s147, %s163
      %p165 = scmp.eq.s32.totalorder %s25, 0
      %p166 = por %p164, %p165
      %s167 = ssub.s32 %s26, %s38
      %p168 = scmp.eq.s32.totalorder %s167, 0
      %s170 = sadd.s32 %s169, 1
      %s171 = scalar_select %p168, %s169, %s170
      %p174 = pneg %p168
      %p175 = scmp.eq.s32.totalorder %s19, 1
      %p176 = por %p174, %p175
      %p177 = scmp.ne.s32.totalorder %s169, %s172
      %p178 = scmp.eq.s32.totalorder %s19, 0
      %p179 = por %p177, %p178
      %p180 = scmp.ne.s32.totalorder %s169, %s172
      %p181 = scmp.eq.s32.totalorder %s24, 1
      %p182 = por %p180, %p181
      %p183 = scmp.ne.s32.totalorder %s172, %s173
      %p184 = scmp.eq.s32.totalorder %s24, 0
      %p185 = por %p183, %p184
      %p186 = scmp.ne.s32.totalorder %s172, %s173
      %p187 = scmp.eq.s32.totalorder %s25, 1
      %p188 = por %p186, %p187
      %p190 = scmp.ne.s32.totalorder %s173, %s189
      %p191 = scmp.eq.s32.totalorder %s25, 0
      %p192 = por %p190, %p191
      %p193 = scmp.le.s32.totalorder 1, %s19
      %p194 = scmp.lt.s32.totalorder %s19, 3
      %p195 = pnand %p193, %p194
      %p196 = pneg %p195
      // Predicated region
      $region9: #{tpu_custom_call.1} parent=5 // pred_check
        _
      $region10: #{tpu_custom_call.1} parent=5 // pred_check_branch
        %198 = sbr.rel (%p195) target = $region12
      $region11: #{tpu_custom_call.1} parent=5 // pred_region
        %s199 = ssub.s32 %s19, 1
      $region12: #{tpu_custom_call.1} parent=5 // pred_fallthru
        _
      %p200 = scmp.lt.s32.totalorder %s19, 2
      // Predicated region
      $region13: #{tpu_custom_call.1} parent=5 // pred_check
        %p201 = pneg %p200
      $region14: #{tpu_custom_call.1} parent=5 // pred_check_branch
        %203 = sbr.rel (%p201) target = $region16
      $region15: #{tpu_custom_call.1} parent=5 // pred_region
        // Predicated region
        $region17: #{tpu_custom_call.1} parent=15 // pred_check
          %p204 = pneg %p59
        $region18: #{tpu_custom_call.1} parent=15 // pred_check_branch
          %206 = sbr.rel (%p204) target = $region20
        $region19: #{tpu_custom_call.1} parent=15 // pred_region
          %s207 = sand.u32 %s49, 1
          %s208 = scalar_lea.sflag [#allocation3], %s207
          %s209 = sand.u32 %s49, 1
          %s210 = smul.addr %s209, 8
          %s211 = scalar_lea.vmem [#allocation2], %s210
          %s212 = smul.u32 %s26, 2
          %s213 = sadd.s32 %s212, %s27
          %p214 = scmp.lt.s32.totalorder %s213, 1
          %s215 = scalar_select %p214, %s213, 1
          %s217 = ssub.s32 128, 128
          %218 = vsyncadd %s208, %s217
          %s219 = smul.addr %s215, 128
          %s220 = scalar_lea.hbm %s0, %s219
          %s222 = sshll.u32 %s211, 4
          %s223 = int_to_ptr.vmem [resolvable:$true] %s222
          %225 = dma.hbm_to_vmem [thread:$0]  %s220, 128, %s223, %s208
        $region20: #{tpu_custom_call.1} parent=15 // pred_fallthru
          _
        // Predicated region
        $region21: #{tpu_custom_call.1} parent=15 // pred_check
          %p226 = pneg %p93
        $region22: #{tpu_custom_call.1} parent=15 // pred_check_branch
          %228 = sbr.rel (%p226) target = $region24
        $region23: #{tpu_custom_call.1} parent=15 // pred_region
          %s229 = sand.u32 %s19, 1
          %s230 = scalar_lea.sflag [#allocation6], %s229
          %s231 = sand.u32 %s83, 1
          %s232 = smul.addr %s231, 8
          %s233 = scalar_lea.vmem [#allocation5], %s232
          %s234 = smul.u32 %s26, 2
          %s235 = sadd.s32 %s234, %s27
          %p236 = scmp.lt.s32.totalorder %s235, 1
          %s237 = scalar_select %p236, %s235, 1
          %s239 = ssub.s32 128, 128
          %240 = vsyncadd %s230, %s239
          %s241 = smul.addr %s237, 128
          %s242 = scalar_lea.hbm %s1, %s241
          %s244 = sshll.u32 %s233, 4
          %s245 = int_to_ptr.vmem [resolvable:$true] %s244
          %247 = dma.hbm_to_vmem [thread:$0]  %s242, 128, %s245, %s230
        $region24: #{tpu_custom_call.1} parent=15 // pred_fallthru
          _
        // Predicated region
        $region25: #{tpu_custom_call.1} parent=15 // pred_check
          %p248 = pneg %p127
        $region26: #{tpu_custom_call.1} parent=15 // pred_check_branch
          %250 = sbr.rel (%p248) target = $region28
        $region27: #{tpu_custom_call.1} parent=15 // pred_region
          %s251 = sand.u32 %s19, 1
          %s252 = scalar_lea.sflag [#allocation6], %s251
          %s253 = sand.u32 %s117, 1
          %s254 = smul.addr %s253, 8
          %s255 = scalar_lea.vmem [#allocation7], %s254
          %s256 = smul.u32 %s26, 2
          %s257 = sadd.s32 %s256, %s27
          %p258 = scmp.lt.s32.totalorder %s257, 1
          %s259 = scalar_select %p258, %s257, 1
          %s261 = ssub.s32 128, 128
          %262 = vsyncadd %s252, %s261
          %s263 = smul.addr %s259, 128
          %s264 = scalar_lea.hbm %s2, %s263
          %s266 = sshll.u32 %s255, 4
          %s267 = int_to_ptr.vmem [resolvable:$true] %s266
          %269 = dma.hbm_to_vmem [thread:$0]  %s264, 128, %s267, %s252
        $region28: #{tpu_custom_call.1} parent=15 // pred_fallthru
          _
      $region16: #{tpu_custom_call.1} parent=5 // pred_fallthru
        _
      %p270 = scmp.le.s32.totalorder 1, %s19
      %p271 = scmp.lt.s32.totalorder %s19, 3
      %p272 = pnand %p270, %p271
      %p273 = pneg %p272
      // Predicated region
      $region29: #{tpu_custom_call.1} parent=5 // pred_check
        _
      $region30: #{tpu_custom_call.1} parent=5 // pred_check_branch
        %275 = sbr.rel (%p272) target = $region32
      $region31: #{tpu_custom_call.1} parent=5 // pred_region
        %s276 = ssub.s32 %s19, 1
        %s277 = sand.u32 %s52, 1
        %s278 = scalar_lea.sflag [#allocation3], %s277
        %s279 = sand.u32 %s52, 1
        %s280 = smul.addr %s279, 8
        %s281 = scalar_lea.vmem [#allocation2], %s280
        // Predicated region
        $region33: #{tpu_custom_call.1} parent=31 // pred_check
          %p282 = pneg %p65
        $region34: #{tpu_custom_call.1} parent=31 // pred_check_branch
          %284 = sbr.rel (%p282) target = $region36
        $region35: #{tpu_custom_call.1} parent=31 // pred_region
          %285 = dma.done %s278, 128
        $region36: #{tpu_custom_call.1} parent=31 // pred_fallthru
          _
        %s286 = sand.u32 %s24, 1
        %s287 = scalar_lea.sflag [#allocation6], %s286
        %s288 = sand.u32 %s86, 1
        %s289 = smul.addr %s288, 8
        %s290 = scalar_lea.vmem [#allocation5], %s289
        // Predicated region
        $region37: #{tpu_custom_call.1} parent=31 // pred_check
          %p291 = pneg %p99
        $region38: #{tpu_custom_call.1} parent=31 // pred_check_branch
          %293 = sbr.rel (%p291) target = $region40
        $region39: #{tpu_custom_call.1} parent=31 // pred_region
          %294 = dma.done %s287, 128
        $region40: #{tpu_custom_call.1} parent=31 // pred_fallthru
          _
        %s295 = sand.u32 %s24, 1
        %s296 = scalar_lea.sflag [#allocation6], %s295
        %s297 = sand.u32 %s120, 1
        %s298 = smul.addr %s297, 8
        %s299 = scalar_lea.vmem [#allocation7], %s298
        // Predicated region
        $region41: #{tpu_custom_call.1} parent=31 // pred_check
          %p300 = pneg %p133
        $region42: #{tpu_custom_call.1} parent=31 // pred_check_branch
          %302 = sbr.rel (%p300) target = $region44
        $region43: #{tpu_custom_call.1} parent=31 // pred_region
          %303 = dma.done %s296, 128
        $region44: #{tpu_custom_call.1} parent=31 // pred_fallthru
          _
        %s304 = sand.u32 %s52, 1
        %s305 = scalar_lea.sflag [#allocation3], %s304
        %s306 = sand.u32 %s52, 1
        %s307 = smul.addr %s306, 8
        %s308 = scalar_lea.vmem [#allocation2], %s307
        %p309 = pneg %p65
        %p310 = pneg %p62
        %s311 = sand.u32 %s24, 1
        %s312 = scalar_lea.sflag [#allocation6], %s311
        %s313 = sand.u32 %s86, 1
        %s314 = smul.addr %s313, 8
        %s315 = scalar_lea.vmem [#allocation5], %s314
        %p316 = pneg %p99
        %p317 = pneg %p96
        %s318 = sand.u32 %s24, 1
        %s319 = scalar_lea.sflag [#allocation6], %s318
        %s320 = sand.u32 %s120, 1
        %s321 = smul.addr %s320, 8
        %s322 = scalar_lea.vmem [#allocation7], %s321
        %p323 = pneg %p133
        %p324 = pneg %p130
        %p325 = pneg %p159
        %p326 = pneg %p156
        %p327 = pneg %p185
        %p328 = pneg %p182
        %s329 = smul.u32 %s28, 2
        %s330 = sadd.s32 %s329, %s29
        %p331 = scmp.lt.s32.totalorder %s330, 1
        %s332 = scalar_select %p331, %s330, 1
        %s333 = smul.u32 %s28, 2
        %s334 = sadd.s32 %s333, %s29
        %p335 = scmp.lt.s32.totalorder %s334, 1
        %s336 = scalar_select %p335, %s334, 1
        %s337 = smul.u32 %s28, 2
        %s338 = sadd.s32 %s337, %s29
        %p339 = scmp.lt.s32.totalorder %s338, 1
        %s340 = scalar_select %p339, %s338, 1
        %p341 = scmp.eq.s32.totalorder %s29, 0
        // Predicated region
        $region45: #{tpu_custom_call.1} parent=31 // pred_check
          %p342 = pneg %p341
        $region46: #{tpu_custom_call.1} parent=31 // pred_check_branch
          %344 = sbr.rel (%p342) target = $region48
        $region47: #{tpu_custom_call.1} parent=31 // pred_region
          %345 = vst [vmem:[#allocation8] sm:$0xff] 0.0
          %346 = vst [vmem:[#allocation9] sm:$0xff] 0.0
        $region48: #{tpu_custom_call.1} parent=31 // pred_fallthru
          _
        %s347 = smul.u32 %s28, 2
        %s348 = sadd.s32 %s347, %s29
        %s349 = smul.u32 %s348, 8
        %s350 = sadd.s32 %s349, 8
        %p351 = scmp.le.s32.totalorder %s350, 16
        // Predicated region
        $region49: #{tpu_custom_call.1} parent=31 // pred_check
          %p352 = pneg %p351
        $region50: #{tpu_custom_call.1} parent=31 // pred_check_branch
          %354 = sbr.rel (%p352) target = $region52
        $region51: #{tpu_custom_call.1} parent=31 // pred_region
          %v355 = vld [vmem:[%s299] sm:$0xff]
          %vm356 = vcmp.gt.f32.partialorder %v355, 0.0
          %v357 = vld [vmem:[%s281] sm:$0xff]
          %v358 = vld [vmem:[%s290] sm:$0xff]
          %v359 = vsub.f32 %v357, %v358
          %v360 = vand.u32 2147483647, %v359
          %v361 = vld [vmem:[#allocation8] sm:$0xff]
          %v362 = vsel %vm356, %v360, 0.0
          %v363 = vadd.f32 %v362, 0.0
          %v364 = vadd.f32 %v361, %v363
          %365 = vst [vmem:[#allocation8] sm:$0xff] %v364
          %v366 = vld [vmem:[#allocation9] sm:$0xff]
          %v367 = vsel %vm356, 1.0, 0.0
          %v368 = vadd.f32 %v367, 0.0
          %v369 = vadd.f32 %v366, %v368
          %370 = vst [vmem:[#allocation9] sm:$0xff] %v369
        $region52: #{tpu_custom_call.1} parent=31 // pred_fallthru
          _
        %p371 = scmp.gt.s32.totalorder %s350, 16
        // Predicated region
        $region53: #{tpu_custom_call.1} parent=31 // pred_check
          %p372 = pneg %p371
        $region54: #{tpu_custom_call.1} parent=31 // pred_check_branch
          %374 = sbr.rel (%p372) target = $region56
        $region55: #{tpu_custom_call.1} parent=31 // pred_region
          %v375 = vlaneseq
          %v376 = vshrl.u32 %v375, 7
          %v377 = vstv %s349
          %v378 = vadd.s32 %v377, %v376
          %vm379 = vcmp.lt.s32.totalorder %v378, 16
          %v380 = vld [vmem:[%s299] sm:$0xff]
          %vm381 = vcmp.gt.f32.partialorder %v380, 0.0
          %vm382 = vmand %vm381, %vm379
          %v383 = vld [vmem:[%s281] sm:$0xff]
          %v384 = vld [vmem:[%s290] sm:$0xff]
          %v385 = vsub.f32 %v383, %v384
          %v386 = vand.u32 2147483647, %v385
          %v387 = vld [vmem:[#allocation8] sm:$0xff]
          %v388 = vsel %vm382, %v386, 0.0
          %v389 = vadd.f32 %v388, 0.0
          %v390 = vadd.f32 %v387, %v389
          %391 = vst [vmem:[#allocation8] sm:$0xff] %v390
          %v392 = vld [vmem:[#allocation9] sm:$0xff]
          %v393 = vsel %vm382, 1.0, 0.0
          %v394 = vadd.f32 %v393, 0.0
          %v395 = vadd.f32 %v392, %v394
          %396 = vst [vmem:[#allocation9] sm:$0xff] %v395
        $region56: #{tpu_custom_call.1} parent=31 // pred_fallthru
          _
        // Predicated region
        $region57: #{tpu_custom_call.1} parent=31 // pred_check
          %p397 = pneg %p156
        $region58: #{tpu_custom_call.1} parent=31 // pred_check_branch
          %399 = sbr.rel (%p397) target = $region60
        $region59: #{tpu_custom_call.1} parent=31 // pred_region
          %s401 = ssub.s32 128, 128
          %402 = vsyncadd [#allocation4], %s401
          %s403 = smul.addr %s28, 128
          %s404 = scalar_lea.hbm %s3, %s403
          %s406 = sshll.u32 [#allocation8], 4
          %s407 = int_to_ptr.vmem [resolvable:$true] %s406
          %409 = dma.vmem_to_hbm [thread:$0]  %s407, 128, %s404, [#allocation4]
        $region60: #{tpu_custom_call.1} parent=31 // pred_fallthru
          _
        // Predicated region
        $region61: #{tpu_custom_call.1} parent=31 // pred_check
          %p410 = pneg %p182
        $region62: #{tpu_custom_call.1} parent=31 // pred_check_branch
          %412 = sbr.rel (%p410) target = $region64
        $region63: #{tpu_custom_call.1} parent=31 // pred_region
          %s414 = ssub.s32 128, 128
          %415 = vsyncadd [#allocation10], %s414
          %s416 = smul.addr %s28, 128
          %s417 = scalar_lea.hbm %s4, %s416
          %s419 = sshll.u32 [#allocation9], 4
          %s420 = int_to_ptr.vmem [resolvable:$true] %s419
          %422 = dma.vmem_to_hbm [thread:$0]  %s420, 128, %s417, [#allocation10]
        $region64: #{tpu_custom_call.1} parent=31 // pred_fallthru
          _
        // Predicated region
        $region65: #{tpu_custom_call.1} parent=31 // pred_check
          %p423 = pneg %p156
        $region66: #{tpu_custom_call.1} parent=31 // pred_check_branch
          %425 = sbr.rel (%p423) target = $region68
        $region67: #{tpu_custom_call.1} parent=31 // pred_region
          %426 = dma.done [#allocation4], 128
        $region68: #{tpu_custom_call.1} parent=31 // pred_fallthru
          _
        // Predicated region
        $region69: #{tpu_custom_call.1} parent=31 // pred_check
          %p427 = pneg %p182
        $region70: #{tpu_custom_call.1} parent=31 // pred_check_branch
          %429 = sbr.rel (%p427) target = $region72
        $region71: #{tpu_custom_call.1} parent=31 // pred_region
          %430 = dma.done [#allocation10], 128
        $region72: #{tpu_custom_call.1} parent=31 // pred_fallthru
          _
      $region32: #{tpu_custom_call.1} parent=5 // pred_fallthru
        _
      %p431 = scmp.le.s32.totalorder 2, %s19
      // Predicated region
      $region73: #{tpu_custom_call.1} parent=5 // pred_check
        %p432 = pneg %p431
      $region74: #{tpu_custom_call.1} parent=5 // pred_check_branch
        %434 = sbr.rel (%p432) target = $region76
      $region75: #{tpu_custom_call.1} parent=5 // pred_region
        %s435 = ssub.s32 %s19, 2
      $region76: #{tpu_custom_call.1} parent=5 // pred_fallthru
        _
    $region6: #{tpu_custom_call.1} parent=1 // loop_footer
      %s23 = sadd.s32 1, %s19
    $region7: #{tpu_custom_call.1} parent=1 // loop_footer_branch
      %18 = sbr.rel target = $region3
    $region8: #{tpu_custom_call.1} parent=1 // loop_exit
      _
    %436 = vsyncpa [#allocation3], 1
    %s437 = scalar_lea.sflag [#allocation3], 1
    %438 = vsyncpa %s437, 1
    %439 = vsyncpa [#allocation6], 1
    %s440 = scalar_lea.sflag [#allocation6], 1
    %441 = vsyncpa %s440, 1
    %442 = vsyncpa [#allocation4], 1
    %s443 = scalar_lea.sflag [#allocation4], 1
    %444 = vsyncpa %s443, 1
    %445 = vsyncpa [#allocation10], 1

</llo_original>
